<compile_context>
chip_gen: v6e
topology: v6e:2x2x1
jax: 0.10.0
libtpu: 0.0.40
codegen_flags: <defaults>
</compile_context>

<pallas_src>
import functools
import math

import jax
import jax.numpy as jnp
from jax.experimental import pallas as pl
from jax.experimental.pallas import tpu as pltpu


# ----------------------------- small helpers --------------------------------

def _round_up(v, m):
    return (v + m - 1) // m * m


def _pad2(arr, rows, cols):
    r, c = arr.shape
    return jnp.pad(arr, ((0, rows - r), (0, cols - c)))


def _vmem_capacity_bytes():
    """Best-effort VMEM capacity (v5e/v6e: 128 MiB, v7x: 64 MiB)."""
    try:
        info = pltpu.get_tpu_info()
        cap = getattr(info, "vmem_capacity_bytes", None)
        if cap:
            return int(cap)
    except Exception:
        pass
    return 64 * 1024 * 1024          # conservative: assume v7x-sized VMEM


def _pick_tile(n):
    """Largest tile in {512, 256, 128} such that node padding keeps the
    dominant A traffic blow-up under ~10% and >=2 row tiles remain so v7x can
    shard the 'parallel' axis across both TensorCores."""
    n_min = _round_up(max(n, 256), 128)
    for t in (512, 256, 128):
        np_t = _round_up(max(n, 256), t)
        if np_t * np_t <= 1.1 * n_min * n_min and np_t // t >= 2:
            return t
    return 128


def _streamed_spec(block, index_map):
    """Streamed BlockSpec with a 3-deep pipeline (DMA-exposed otherwise)."""
    try:
        return pl.BlockSpec(block, index_map, pipeline_mode=pl.Buffered(3))
    except TypeError:
        return pl.BlockSpec(block, index_map)


def _rhs_ktile(rhs_ref, tk, rhs_resident):
    """Current K tile of the (narrow) RHS: slice a resident block, or take the
    streamed block as-is."""
    if rhs_resident:
        start = pl.multiple_of(pl.program_id(1) * tk, tk)
        return rhs_ref[pl.ds(start, tk), :]
    return rhs_ref[...]


# -------------------------------- kernels -----------------------------------

def xw_kernel(x_ref, w_ref, o_ref):
    """Prologue: one row tile of XW1 = X @ W1 (f32 MXU accumulate, bf16 out)."""
    o_ref[...] = jnp.dot(x_ref[...], w_ref[...],
                         preferred_element_type=jnp.float32).astype(o_ref.dtype)


def layer1_proj_first_kernel(a_ref, xw1_ref, b1_ref, w2_ref, m2_ref, acc_ref,
                             *, tk, rhs_resident):
    """Row tile of  M2 = relu(A @ (X@W1) + b1) @ W2,  K(=N) reduction on axis 1."""
    k = pl.program_id(1)

    @pl.when(k == 0)
    def _():
        acc_ref[...] = jnp.zeros_like(acc_ref)

    acc_ref[...] += jnp.dot(a_ref[...], _rhs_ktile(xw1_ref, tk, rhs_resident),
                            preferred_element_type=jnp.float32)

    @pl.when(k == pl.num_programs(1) - 1)
    def _():
        h = jnp.maximum(acc_ref[...] + b1_ref[...], 0.0)          # bias + ReLU (f32)
        m2 = jnp.dot(h.astype(jnp.bfloat16), w2_ref[...],
                     preferred_element_type=jnp.float32)
        m2_ref[...] = m2.astype(m2_ref.dtype)


def layer1_agg_first_kernel(a_ref, x_ref, w1_ref, b1_ref, w2_ref, m2_ref, acc_ref,
                            *, tk, rhs_resident):
    """Row tile of  M2 = relu((A @ X) @ W1 + b1) @ W2  (only when F_in < hidden)."""
    k = pl.program_id(1)

    @pl.when(k == 0)
    def _():
        acc_ref[...] = jnp.zeros_like(acc_ref)

    acc_ref[...] += jnp.dot(a_ref[...], _rhs_ktile(x_ref, tk, rhs_resident),
                            preferred_element_type=jnp.float32)

    @pl.when(k == pl.num_programs(1) - 1)
    def _():
        h = jnp.dot(acc_ref[...].astype(jnp.bfloat16), w1_ref[...],
                    preferred_element_type=jnp.float32) + b1_ref[...]
        h = jnp.maximum(h, 0.0)
        m2 = jnp.dot(h.astype(jnp.bfloat16), w2_ref[...],
                     preferred_element_type=jnp.float32)
        m2_ref[...] = m2.astype(m2_ref.dtype)


def layer2_kernel(a_ref, m2_ref, b2_ref, o_ref, *, tk, rhs_resident, out_c):
    """Row tile of  out = log_softmax(A @ M2 + b2, axis=1).

    Accumulates directly into the f32 output block (its block index is constant
    over K), so no VMEM scratch is needed."""
    k = pl.program_id(1)

    @pl.when(k == 0)
    def _():
        o_ref[...] = jnp.zeros_like(o_ref)

    o_ref[...] += jnp.dot(a_ref[...], _rhs_ktile(m2_ref, tk, rhs_resident),
                          preferred_element_type=jnp.float32)

    @pl.when(k == pl.num_programs(1) - 1)
    def _():
        z = o_ref[...] + b2_ref[...]
        # Mask padded class columns so they do not contribute to the softmax.
        col = jax.lax.broadcasted_iota(jnp.int32, z.shape, 1)
        z = jnp.where(col < out_c, z, -1e30)
        m = jnp.max(z, axis=1, keepdims=True)
        lse = jnp.log(jnp.sum(jnp.exp(z - m), axis=1, keepdims=True)) + m
        o_ref[...] = z - lse


# ------------------------------- forward pass -------------------------------

def gcn_forward(x, a_norm, w1, b1, w2, b2, *, tm=None, tk=None):
    """Two-layer GCN forward on a dense normalized adjacency."""
    n, f_in = x.shape
    hid = w1.shape[1]
    out_c = w2.shape[1]

    # Generation-aware budgets.
    vmem_cap = _vmem_capacity_bytes()
    vmem_limit = max(32 << 20, min(vmem_cap - (16 << 20), 100 << 20))
    resident_budget = (16 << 20) if vmem_cap <= (64 << 20) else (48 << 20)

    if tm is None or tk is None:
        t = _pick_tile(n)
        tm = tm or t
        tk = tk or t

    # Pad node dim to a tile multiple (>=256); feature dims to lane-dense 128s.
    np_ = _round_up(max(n, 256), math.lcm(tm, tk))
    fp = _round_up(f_in, 128)
    hp = _round_up(hid, 128)
    cp = _round_up(out_c, 128)

    a_p = _pad2(a_norm, np_, np_).astype(jnp.bfloat16)
    x_p = _pad2(x, np_, fp).astype(jnp.bfloat16)
    w1_p = _pad2(w1, fp, hp).astype(jnp.bfloat16)
    w2_p = _pad2(w2, hp, cp).astype(jnp.bfloat16)
    b1_p = _pad2(b1.reshape(1, -1), 1, hp).astype(jnp.float32)
    b2_p = _pad2(b2.reshape(1, -1), 1, cp).astype(jnp.float32)

    grid = (np_ // tm, np_ // tk)
    cparams = pltpu.CompilerParams(
        dimension_semantics=("parallel", "arbitrary"),
        vmem_limit_bytes=vmem_limit,
    )

    def _rhs_spec(width):
        """Resident RHS (loaded once) when it fits; otherwise streamed K tiles."""
        nbytes = np_ * width * 2                      # bf16
        if 2 * nbytes <= resident_budget:             # x2: possible double buffer
            return pl.BlockSpec((np_, width), lambda i, k: (0, 0)), True
        return _streamed_spec((tk, width), lambda i, k: (k, 0)), False

    a_spec = _streamed_spec((tm, tk), lambda i, k: (i, k))

    # Inner width of the O(N^2) A-matmul = min(fp, hp): project through W1
    # first unless the (padded) feature width is smaller than the hidden width.
    project_first = hp <= fp

    if project_first:
        # ---- prologue: XW1 = X @ W1 (cheap, row-tiled) ----
        xw1 = pl.pallas_call(
            xw_kernel,
            out_shape=jax.ShapeDtypeStruct((np_, hp), jnp.bfloat16),
            grid=(np_ // tm,),
            in_specs=[pl.BlockSpec((tm, fp), lambda i: (i, 0)),
                      pl.BlockSpec((fp, hp), lambda i: (0, 0))],
            out_specs=pl.BlockSpec((tm, hp), lambda i: (i, 0)),
            compiler_params=pltpu.CompilerParams(
                dimension_semantics=("parallel",),
                vmem_limit_bytes=vmem_limit),
        )(x_p, w1_p)

        rhs1_spec, rhs1_res = _rhs_spec(hp)
        # ---- layer 1 (W2 projection fused): M2 = relu(A @ XW1 + b1) @ W2 ----
        m2 = pl.pallas_call(
            functools.partial(layer1_proj_first_kernel, tk=tk, rhs_resident=rhs1_res),
            out_shape=jax.ShapeDtypeStruct((np_, cp), jnp.bfloat16),
            grid=grid,
            in_specs=[
                a_spec,                                        # A row/K tile
                rhs1_spec,                                     # XW1 (resident or K tile)
                pl.BlockSpec((1, hp), lambda i, k: (0, 0)),    # b1
                pl.BlockSpec((hp, cp), lambda i, k: (0, 0)),   # W2 (resident)
            ],
            out_specs=pl.BlockSpec((tm, cp), lambda i, k: (i, 0)),
            scratch_shapes=[pltpu.VMEM((tm, hp), jnp.float32)],
            compiler_params=cparams,
        )(a_p, xw1, b1_p, w2_p)
    else:
        rhs1_spec, rhs1_res = _rhs_spec(fp)
        # ---- layer 1 (aggregate first): M2 = relu((A @ X) @ W1 + b1) @ W2 ----
        m2 = pl.pallas_call(
            functools.partial(layer1_agg_first_kernel, tk=tk, rhs_resident=rhs1_res),
            out_shape=jax.ShapeDtypeStruct((np_, cp), jnp.bfloat16),
            grid=grid,
            in_specs=[
                a_spec,                                        # A row/K tile
                rhs1_spec,                                     # X (resident or K tile)
                pl.BlockSpec((fp, hp), lambda i, k: (0, 0)),   # W1 (resident)
                pl.BlockSpec((1, hp), lambda i, k: (0, 0)),    # b1
                pl.BlockSpec((hp, cp), lambda i, k: (0, 0)),   # W2 (resident)
            ],
            out_specs=pl.BlockSpec((tm, cp), lambda i, k: (i, 0)),
            scratch_shapes=[pltpu.VMEM((tm, fp), jnp.float32)],
            compiler_params=cparams,
        )(a_p, x_p, w1_p, b1_p, w2_p)

    # ---- layer 2: out = log_softmax(A @ M2 + b2, axis=1) ----
    rhs2_spec, rhs2_res = _rhs_spec(cp)
    out_p = pl.pallas_call(
        functools.partial(layer2_kernel, tk=tk, rhs_resident=rhs2_res, out_c=out_c),
        out_shape=jax.ShapeDtypeStruct((np_, cp), jnp.float32),
        grid=grid,
        in_specs=[
            a_spec,                                        # A row/K tile
            rhs2_spec,                                     # M2 (resident or K tile)
            pl.BlockSpec((1, cp), lambda i, k: (0, 0)),    # b2
        ],
        out_specs=pl.BlockSpec((tm, cp), lambda i, k: (i, 0)),
        compiler_params=cparams,
    )(a_p, m2, b2_p)

    return out_p[:n, :out_c]


# ----------------------- graph preprocessing (plain JAX) --------------------

def build_norm_adj(edge_index, num_nodes):
    """Dense symmetric GCN normalization (A + remaining self-loops), plain JAX.

    TODO(synk): for large sparse graphs replace the dense adjacency with a
    PrefetchScalarGridSpec CSR-gather message-passing kernel.
    """
    src, dst = edge_index[0], edge_index[1]
    a = jnp.zeros((num_nodes, num_nodes), jnp.float32).at[dst, src].add(1.0)
    # add_remaining_self_loops: only add a self-loop where none exists.
    diag = jnp.diagonal(a)
    a = a + jnp.diag(jnp.where(diag == 0.0, 1.0, 0.0))
    deg = jnp.sum(a, axis=1)
    dinv = jnp.where(deg > 0.0, jax.lax.rsqrt(deg), 0.0)
    return dinv[:, None] * a * dinv[None, :]


def glorot(key, fan_in, fan_out):
    limit = jnp.sqrt(6.0 / (fan_in + fan_out))
    return jax.random.uniform(key, (fan_in, fan_out), jnp.float32, -limit, limit)


if __name__ == "__main__":
    # Small deterministic problem: 16 nodes, 16 input features, 32 hidden, 8 classes.
    N, IN_C, HID_C, OUT_C = 16, 16, 32, 8

    key = jax.random.PRNGKey(0)
    kx, kw1, kw2 = jax.random.split(key, 3)

    # Node features.
    x = jax.random.normal(kx, (N, IN_C), jnp.float32)

    # Deterministic undirected ring graph as edge_index [2, E].
    ring_src = jnp.arange(N, dtype=jnp.int32)
    ring_dst = (ring_src + 1) % N
    edge_index = jnp.stack([
        jnp.concatenate([ring_src, ring_dst]),
        jnp.concatenate([ring_dst, ring_src]),
    ])

    # Parameters (GCNConv: glorot weights, zero biases).
    w1 = glorot(kw1, IN_C, HID_C)
    b1 = jnp.zeros((HID_C,), jnp.float32)
    w2 = glorot(kw2, HID_C, OUT_C)
    b2 = jnp.zeros((OUT_C,), jnp.float32)

    a_norm = build_norm_adj(edge_index, N)

    out = gcn_forward(x, a_norm, w1, b1, w2, b2)
    out = jax.block_until_ready(out)
    assert out.shape == (N, OUT_C)

    # Sanity 1: log_softmax rows exponentiate-and-sum to 1.
    row_sums = jnp.sum(jnp.exp(out), axis=1)
    assert bool(jnp.all(jnp.abs(row_sums - 1.0) < 1e-3))

    # Sanity 2: matches a plain-JAX f32 reference within bf16 tolerance.
    h_ref = jnp.maximum(a_norm @ (x @ w1) + b1, 0.0)
    z_ref = a_norm @ (h_ref @ w2) + b2
    ref = jax.nn.log_softmax(z_ref, axis=1)
    assert bool(jnp.max(jnp.abs(out - ref)) < 0.1)

    print("KERNEL_OK")
</pallas_src>

<mosaic_0001>
module attributes {stable_mosaic.version = 11 : i64} {
  func.func @xw_kernel(%arg0: i32, %arg1: memref<128x128xbf16, #tpu.memory_space<vmem>>, %arg2: memref<128x128xbf16, #tpu.memory_space<vmem>>, %arg3: memref<128x128xbf16, #tpu.memory_space<vmem>>) attributes {dimension_semantics = [#tpu.dimension_semantics<parallel>], iteration_bounds = array<i64: 2>, scalar_prefetch = 0 : i64, scratch_operands = 0 : i64, tpu.core_type = #tpu.core_type<tc>, window_params = [{transform_indices = @transform_0, window_bounds = array<i64: 128, 128>}, {pipeline_mode = #tpu.pipeline_mode<synchronous>, transform_indices = @transform_1, window_bounds = array<i64: 128, 128>}, {transform_indices = @transform_2, window_bounds = array<i64: 128, 128>}]} {
    %c0 = arith.constant 0 : index
    %c0_0 = arith.constant 0 : index
    %0 = vector.load %arg1[%c0, %c0_0] : memref<128x128xbf16, #tpu.memory_space<vmem>>, vector<128x128xbf16>
    %c0_1 = arith.constant 0 : index
    %c0_2 = arith.constant 0 : index
    %1 = vector.load %arg2[%c0_1, %c0_2] : memref<128x128xbf16, #tpu.memory_space<vmem>>, vector<128x128xbf16>
    %cst = arith.constant dense<0.000000e+00> : vector<128x128xf32>
    %2 = tpu.matmul %0, %1, %cst {dimension_numbers = #tpu.dot_dimension_numbers<[1], [0], [0], [1], [0, 0, 1, 1], [], []>} : vector<128x128xbf16>, vector<128x128xbf16>, vector<128x128xf32> -> vector<128x128xf32>
    %3 = arith.truncf %2 : vector<128x128xf32> to vector<128x128xbf16>
    %c0_3 = arith.constant 0 : index
    %c0_4 = arith.constant 0 : index
    %4 = vector.load %arg3[%c0_3, %c0_4] : memref<128x128xbf16, #tpu.memory_space<vmem>>, vector<128x128xbf16>
    tpu.vector_store %arg3[%c0_3, %c0_4], %3 {strides = array<i32>} : memref<128x128xbf16, #tpu.memory_space<vmem>>, vector<128x128xbf16>,
    return
  }
  func.func @transform_0(%arg0: i32) -> (i32, i32) {
    %c0_i32 = arith.constant 0 : i32
    %c0_i32_0 = arith.constant 0 : i32
    return %arg0, %c0_i32 : i32, i32
  }
  func.func @transform_1(%arg0: i32) -> (i32, i32) {
    %c0_i32 = arith.constant 0 : i32
    %c0_i32_0 = arith.constant 0 : i32
    %c0_i32_1 = arith.constant 0 : i32
    return %c0_i32, %c0_i32_0 : i32, i32
  }
  func.func @transform_2(%arg0: i32) -> (i32, i32) {
    %c0_i32 = arith.constant 0 : i32
    %c0_i32_0 = arith.constant 0 : i32
    return %arg0, %c0_i32 : i32, i32
  }
}

</mosaic_0001>

<llo_original>
// kernel: tpu_custom_call.1
$region0: #{tpu_custom_call.1}
  #allocation0 [shape = 'u32[]', space=smem, size = 0x4, offset = 0x4, fixed_abs, tag = 'smem constant byte address 0x4 - core index']
  #allocation1 [shape = 'u32[144,128]{1,0:T(1,128)}', space=vmem, size = 0x12000, scoped, tag = 'internal scratch']
  %s0 = inlined_call_operand.hbm [shape: bf16[256,128], index: 0, kind: input, shape index: {}]
  %s1 = inlined_call_operand.hbm [shape: bf16[128,128], index: 1, kind: input, shape index: {}]
  %s2 = inlined_call_operand.hbm [shape: bf16[256,128], index: 2, kind: output, shape index: {}]
  %s3 = sld [smem:[#allocation0]]
  $region49: #{tpu_custom_call.1} parent=0
    _
  %s5 = ssub.s32 1, %s3
  %s6 = scalar_select 0, %s5, %s3
  $region1: #{tpu_custom_call.1} parent=0
    #allocation2 [shape = 'u8[65536]{0}', space=vmem, size = 0x10000, scoped, tag = 'input window, operand 0']
    #allocation3 [shape = 's32[2]{0}', space=sflag, size = 0x8, scoped, tag = 'scoped memory for tpu_custom_call.1']
    #allocation4 [shape = 's32[2]{0}', space=sflag, size = 0x8, scoped, tag = 'scoped memory for tpu_custom_call.1']
    #allocation5 [shape = 'u8[32768]{0}', space=vmem, size = 0x8000, scoped, tag = 'input window, operand 1, single buffered']
    #allocation6 [shape = 's32[1]{0}', space=sflag, size = 0x4, scoped, tag = 'scoped memory for tpu_custom_call.1']
    #allocation7 [shape = 'u8[65536]{0}', space=vmem, size = 0x10000, scoped, tag = 'output window, operand 0']
    %7 = vsyncpa [#allocation3], 0
    %s8 = scalar_lea.sflag [#allocation3], 1
    %9 = vsyncpa %s8, 0
    %10 = vsyncpa [#allocation6], 0
    %11 = vsyncpa [#allocation4], 0
    %s12 = scalar_lea.sflag [#allocation4], 1
    %13 = vsyncpa %s12, 0
    loop: start=0, step=1, limit=4
    $region2: #{tpu_custom_call.1} parent=1 // loop_pre_header
      _
    $region3: #{tpu_custom_call.1} parent=1 // loop_header
      %s15 = sphi 0, %s19
      %p16 = scmp.ge.s32.totalorder %s15, 4
      %s25 = sphi 0, %s27
      %s28 = sphi 0, %s25
      %s29 = sphi 0, %s28
      %s45 = sphi 0, %s29
      %s49 = sphi 0, %s49
      %s51 = sphi 0, %s49
      %s52 = sphi 0, %s51
      %s66 = sphi 0, %s52
      %s72 = sphi 0, %s74
      %s75 = sphi 0, %s72
      %s76 = sphi 0, %s75
      %s92 = sphi 0, %s76
    $region4: #{tpu_custom_call.1} parent=1 // loop_header_branch
      %18 = sbr.rel (%p16) target = $region8
    $region5: #{tpu_custom_call.1} parent=1 // loop_body
      %s20 = ssub.s32 %s15, 1
      %s21 = ssub.s32 %s15, 2
      %s22 = sadd.s32 %s15, 1
      %s23 = ssub.s32 %s15, %s22
      %p24 = scmp.eq.s32.totalorder %s23, 0
      %s26 = sadd.s32 %s25, 1
      %s27 = scalar_select %p24, %s25, %s26
      %p30 = pneg %p24
      %p31 = scmp.eq.s32.totalorder %s15, 1
      %p32 = por %p30, %p31
      %p33 = scmp.ne.s32.totalorder %s25, %s28
      %p34 = scmp.eq.s32.totalorder %s15, 0
      %p35 = por %p33, %p34
      %p36 = scmp.ne.s32.totalorder %s25, %s28
      %p37 = scmp.eq.s32.totalorder %s20, 1
      %p38 = por %p36, %p37
      %p39 = scmp.ne.s32.totalorder %s28, %s29
      %p40 = scmp.eq.s32.totalorder %s20, 0
      %p41 = por %p39, %p40
      %p42 = scmp.ne.s32.totalorder %s28, %s29
      %p43 = scmp.eq.s32.totalorder %s21, 1
      %p44 = por %p42, %p43
      %p46 = scmp.ne.s32.totalorder %s29, %s45
      %p47 = scmp.eq.s32.totalorder %s21, 0
      %p48 = por %p46, %p47
      %s50 = sadd.s32 %s49, 1
      %p53 = scmp.eq.s32.totalorder %s15, 1
      %p54 = scmp.ne.s32.totalorder %s49, %s51
      %p55 = scmp.eq.s32.totalorder %s15, 0
      %p56 = por %p54, %p55
      %p57 = scmp.ne.s32.totalorder %s49, %s51
      %p58 = scmp.eq.s32.totalorder %s20, 1
      %p59 = por %p57, %p58
      %p60 = scmp.ne.s32.totalorder %s51, %s52
      %p61 = scmp.eq.s32.totalorder %s20, 0
      %p62 = por %p60, %p61
      %p63 = scmp.ne.s32.totalorder %s51, %s52
      %p64 = scmp.eq.s32.totalorder %s21, 1
      %p65 = por %p63, %p64
      %p67 = scmp.ne.s32.totalorder %s52, %s66
      %p68 = scmp.eq.s32.totalorder %s21, 0
      %p69 = por %p67, %p68
      %s70 = ssub.s32 %s15, %s22
      %p71 = scmp.eq.s32.totalorder %s70, 0
      %s73 = sadd.s32 %s72, 1
      %s74 = scalar_select %p71, %s72, %s73
      %p77 = pneg %p71
      %p78 = scmp.eq.s32.totalorder %s15, 1
      %p79 = por %p77, %p78
      %p80 = scmp.ne.s32.totalorder %s72, %s75
      %p81 = scmp.eq.s32.totalorder %s15, 0
      %p82 = por %p80, %p81
      %p83 = scmp.ne.s32.totalorder %s72, %s75
      %p84 = scmp.eq.s32.totalorder %s20, 1
      %p85 = por %p83, %p84
      %p86 = scmp.ne.s32.totalorder %s75, %s76
      %p87 = scmp.eq.s32.totalorder %s20, 0
      %p88 = por %p86, %p87
      %p89 = scmp.ne.s32.totalorder %s75, %s76
      %p90 = scmp.eq.s32.totalorder %s21, 1
      %p91 = por %p89, %p90
      %p93 = scmp.ne.s32.totalorder %s76, %s92
      %p94 = scmp.eq.s32.totalorder %s21, 0
      %p95 = por %p93, %p94
      %p96 = scmp.le.s32.totalorder 1, %s15
      %p97 = scmp.lt.s32.totalorder %s15, 3
      %p98 = pnand %p96, %p97
      %p99 = pneg %p98
      // Predicated region
      $region9: #{tpu_custom_call.1} parent=5 // pred_check
        _
      $region10: #{tpu_custom_call.1} parent=5 // pred_check_branch
        %101 = sbr.rel (%p98) target = $region12
      $region11: #{tpu_custom_call.1} parent=5 // pred_region
        %s102 = ssub.s32 %s15, 1
        // Predicated region
        $region13: #{tpu_custom_call.1} parent=11 // pred_check
          %p103 = pneg %p62
        $region14: #{tpu_custom_call.1} parent=11 // pred_check_branch
          %105 = sbr.rel (%p103) target = $region16
        $region15: #{tpu_custom_call.1} parent=11 // pred_region
          %s107 = ssub.s32 1024, 1024
          %108 = vsyncadd [#allocation6], %s107
          %s109 = sshll.u32 [#allocation5], 4
          %s110 = int_to_ptr.vmem [resolvable:$true] %s109
          %115 = dma.hbm_to_vmem [thread:$0]  %s1, 1024, %s110, [#allocation6], 64, 64, 4
        $region16: #{tpu_custom_call.1} parent=11 // pred_fallthru
          _
      $region12: #{tpu_custom_call.1} parent=5 // pred_fallthru
        _
      %p116 = scmp.lt.s32.totalorder %s15, 2
      // Predicated region
      $region17: #{tpu_custom_call.1} parent=5 // pred_check
        %p117 = pneg %p116
      $region18: #{tpu_custom_call.1} parent=5 // pred_check_branch
        %119 = sbr.rel (%p117) target = $region20
      $region19: #{tpu_custom_call.1} parent=5 // pred_region
        // Predicated region
        $region21: #{tpu_custom_call.1} parent=19 // pred_check
          %p120 = pneg %p35
        $region22: #{tpu_custom_call.1} parent=19 // pred_check_branch
          %122 = sbr.rel (%p120) target = $region24
        $region23: #{tpu_custom_call.1} parent=19 // pred_region
          %s123 = sand.u32 %s25, 1
          %s124 = scalar_lea.sflag [#allocation3], %s123
          %s125 = sand.u32 %s25, 1
          %s126 = smul.addr %s125, 64
          %s127 = scalar_lea.vmem [#allocation2], %s126
          %s128 = smul.u32 16, %s15
          %s130 = ssub.s32 1024, 1024
          %131 = vsyncadd %s124, %s130
          %s132 = smul.addr %s128, 64
          %s133 = scalar_lea.hbm %s0, %s132
          %s134 = sshll.u32 %s127, 4
          %s135 = int_to_ptr.vmem [resolvable:$true] %s134
          %140 = dma.hbm_to_vmem [thread:$0]  %s133, 1024, %s135, %s124, 64, 64, 4
        $region24: #{tpu_custom_call.1} parent=19 // pred_fallthru
          _
      $region20: #{tpu_custom_call.1} parent=5 // pred_fallthru
        _
      %p141 = scmp.le.s32.totalorder 1, %s15
      %p142 = scmp.lt.s32.totalorder %s15, 3
      %p143 = pnand %p141, %p142
      %p144 = pneg %p143
      // Predicated region
      $region25: #{tpu_custom_call.1} parent=5 // pred_check
        _
      $region26: #{tpu_custom_call.1} parent=5 // pred_check_branch
        %146 = sbr.rel (%p143) target = $region28
      $region27: #{tpu_custom_call.1} parent=5 // pred_region
        %s147 = ssub.s32 %s15, 1
        %s148 = sand.u32 %s28, 1
        %s149 = scalar_lea.sflag [#allocation3], %s148
        %s150 = sand.u32 %s28, 1
        %s151 = smul.addr %s150, 64
        %s152 = scalar_lea.vmem [#allocation2], %s151
        // Predicated region
        $region29: #{tpu_custom_call.1} parent=27 // pred_check
          %p153 = pneg %p41
        $region30: #{tpu_custom_call.1} parent=27 // pred_check_branch
          %155 = sbr.rel (%p153) target = $region32
        $region31: #{tpu_custom_call.1} parent=27 // pred_region
          %156 = dma.done %s149, 1024
        $region32: #{tpu_custom_call.1} parent=27 // pred_fallthru
          _
        // Predicated region
        $region33: #{tpu_custom_call.1} parent=27 // pred_check
          %p157 = pneg %p62
        $region34: #{tpu_custom_call.1} parent=27 // pred_check_branch
          %159 = sbr.rel (%p157) target = $region36
        $region35: #{tpu_custom_call.1} parent=27 // pred_region
          %160 = dma.done [#allocation6], 1024
        $region36: #{tpu_custom_call.1} parent=27 // pred_fallthru
          _
        %s161 = sand.u32 %s28, 1
        %s162 = scalar_lea.sflag [#allocation3], %s161
        %s163 = sand.u32 %s28, 1
        %s164 = smul.addr %s163, 64
        %s165 = scalar_lea.vmem [#allocation2], %s164
        %p166 = pneg %p41
        %p167 = pneg %p38
        %p168 = pneg %p62
        %p169 = pneg %p59
        %p170 = pneg %p88
        %p171 = pneg %p85
        %s172 = sand.u32 %s75, 1
        %s173 = scalar_lea.sflag [#allocation4], %s172
        %s174 = sand.u32 %s75, 1
        %s175 = smul.addr %s174, 64
        %s176 = scalar_lea.vmem [#allocation7], %s175
        %s177 = smul.u32 16, %s20
        %s178 = smul.u32 16, %s20
        %v180 = vld [vmem:[%s152] sm:$0xf]
        %v181 = vld [vmem:[%s152 + $0x4] sm:$0xf]
        %v182 = vld [vmem:[%s152 + $0x8] sm:$0xf]
        %v183 = vld [vmem:[%s152 + $0xc] sm:$0xf]
        %v184 = vld [vmem:[%s152 + $0x10] sm:$0xf]
        %v185 = vld [vmem:[%s152 + $0x14] sm:$0xf]
        %v186 = vld [vmem:[%s152 + $0x18] sm:$0xf]
        %v187 = vld [vmem:[%s152 + $0x1c] sm:$0xf]
        %v188 = vld [vmem:[%s152 + $0x20] sm:$0xf]
        %v189 = vld [vmem:[%s152 + $0x24] sm:$0xf]
        %v190 = vld [vmem:[%s152 + $0x28] sm:$0xf]
        %v191 = vld [vmem:[%s152 + $0x2c] sm:$0xf]
        %v192 = vld [vmem:[%s152 + $0x30] sm:$0xf]
        %v193 = vld [vmem:[%s152 + $0x34] sm:$0xf]
        %v194 = vld [vmem:[%s152 + $0x38] sm:$0xf]
        %v195 = vld [vmem:[%s152 + $0x3c] sm:$0xf]
        %v196 = vld [vmem:[#allocation5] sm:$0xf]
        %v197 = vld [vmem:[#allocation5 + $0x4] sm:$0xf]
        %v198 = vld [vmem:[#allocation5 + $0x8] sm:$0xf]
        %v199 = vld [vmem:[#allocation5 + $0xc] sm:$0xf]
        %v200 = vld [vmem:[#allocation5 + $0x10] sm:$0xf]
        %v201 = vld [vmem:[#allocation5 + $0x14] sm:$0xf]
        %v202 = vld [vmem:[#allocation5 + $0x18] sm:$0xf]
        %v203 = vld [vmem:[#allocation5 + $0x1c] sm:$0xf]
        %v204 = vld [vmem:[#allocation5 + $0x20] sm:$0xf]
        %v205 = vld [vmem:[#allocation5 + $0x24] sm:$0xf]
        %v206 = vld [vmem:[#allocation5 + $0x28] sm:$0xf]
        %v207 = vld [vmem:[#allocation5 + $0x2c] sm:$0xf]
        %v208 = vld [vmem:[#allocation5 + $0x30] sm:$0xf]
        %v209 = vld [vmem:[#allocation5 + $0x34] sm:$0xf]
        %v210 = vld [vmem:[#allocation5 + $0x38] sm:$0xf]
        %v211 = vld [vmem:[#allocation5 + $0x3c] sm:$0xf]
        %v228 = vunpack.c.l.b16 %v180
        %v229 = vunpack.c.l.b16 %v181
        %v230 = vunpack.c.l.b16 %v182
        %v231 = vunpack.c.l.b16 %v183
        %v232 = vunpack.c.l.b16 %v184
        %v233 = vunpack.c.l.b16 %v185
        %v234 = vunpack.c.l.b16 %v186
        %v235 = vunpack.c.l.b16 %v187
        %v236 = vunpack.c.l.b16 %v188
        %v237 = vunpack.c.l.b16 %v189
        %v238 = vunpack.c.l.b16 %v190
        %v239 = vunpack.c.l.b16 %v191
        %v240 = vunpack.c.l.b16 %v192
        %v241 = vunpack.c.l.b16 %v193
        %v242 = vunpack.c.l.b16 %v194
        %v243 = vunpack.c.l.b16 %v195
        %v244 = vpack.c.b16 %v229, %v228
        %v245 = vpack.c.b16 %v231, %v230
        %v246 = vpack.c.b16 %v233, %v232
        %v247 = vpack.c.b16 %v235, %v234
        %v248 = vpack.c.b16 %v237, %v236
        %v249 = vpack.c.b16 %v239, %v238
        %v250 = vpack.c.b16 %v241, %v240
        %v251 = vpack.c.b16 %v243, %v242
        %v276 = vunpack.c.l.b16 %v196
        %v277 = vunpack.c.l.b16 %v197
        %v278 = vunpack.c.l.b16 %v198
        %v279 = vunpack.c.l.b16 %v199
        %v280 = vunpack.c.l.b16 %v200
        %v281 = vunpack.c.l.b16 %v201
        %v282 = vunpack.c.l.b16 %v202
        %v283 = vunpack.c.l.b16 %v203
        %v284 = vunpack.c.l.b16 %v204
        %v285 = vunpack.c.l.b16 %v205
        %v286 = vunpack.c.l.b16 %v206
        %v287 = vunpack.c.l.b16 %v207
        %v288 = vunpack.c.l.b16 %v208
        %v289 = vunpack.c.l.b16 %v209
        %v290 = vunpack.c.l.b16 %v210
        %v291 = vunpack.c.l.b16 %v211
        %v292 = vpack.c.b16 %v277, %v276
        %v293 = vpack.c.b16 %v279, %v278
        %v294 = vpack.c.b16 %v281, %v280
        %v295 = vpack.c.b16 %v283, %v282
        %v296 = vpack.c.b16 %v285, %v284
        %v297 = vpack.c.b16 %v287, %v286
        %v298 = vpack.c.b16 %v289, %v288
        %v299 = vpack.c.b16 %v291, %v290
        %308 = vmatprep.subr.bf16.mxu0 0
        %309 = vmatpush1.bf16.msra.mxu0 %v299
        %310 = vmatprep.subr.bf16.mxu0 0
        %311 = vmatpush1.bf16.msra.mxu0 %v298
        %312 = vmatprep.subr.bf16.mxu0 0
        %313 = vmatpush1.bf16.msra.mxu0 %v297
        %314 = vmatprep.subr.bf16.mxu0 0
        %315 = vmatpush1.bf16.msra.mxu0 %v296
        %316 = vmatprep.subr.bf16.mxu0 0
        %317 = vmatpush1.bf16.msra.mxu0 %v295
        %318 = vmatprep.subr.bf16.mxu0 0
        %319 = vmatpush1.bf16.msra.mxu0 %v294
        %320 = vmatprep.subr.bf16.mxu0 0
        %321 = vmatpush1.bf16.msra.mxu0 %v293
        %322 = vmatprep.subr.bf16.mxu0 0
        %323 = vmatpush1.bf16.msra.mxu0 %v292
        %324 = vmatprep.subr.bf16.mxu0 0
        %325 = vmatpush2.bf16.msra.mxu0 0
        %326 = vmatprep.subr.bf16.mxu0 0
        %327 = vmatpush2.bf16.msra.mxu0 0
        %328 = vmatprep.subr.bf16.mxu0 0
        %329 = vmatpush2.bf16.msra.mxu0 0
        %330 = vmatprep.subr.bf16.mxu0 0
        %331 = vmatpush2.bf16.msra.mxu0 0
        %332 = vmatprep.subr.bf16.mxu0 0
        %333 = vmatpush2.bf16.msra.mxu0 0
        %334 = vmatprep.subr.bf16.mxu0 0
        %335 = vmatpush2.bf16.msra.mxu0 0
        %336 = vmatprep.subr.bf16.mxu0 0
        %337 = vmatpush2.bf16.msra.mxu0 0
        %338 = vmatprep.subr.bf16.mxu0 0
        %339 = vmatpush2.bf16.msra.mxu0 0
        %340 = vmatprep.mubr.bf16.mxu0 0
        %341 = vmatmul.mubr.bf16.gmra.mxu0 %v244
        %v342 = vpop.f32.mrf.mxu0
        %v343 = vadd.f32 0.0, %v342
        %v344 = vpop.f32.mrf.mxu0
        %v345 = vpop.f32.mrf.mxu0
        %v346 = vadd.f32 0.0, %v345
        %v347 = vpop.f32.mrf.mxu0
        %348 = vmatprep.mubr.bf16.mxu0 0
        %349 = vmatmul.mubr.bf16.gmra.mxu0 %v245
        %v350 = vpop.f32.mrf.mxu0
        %v351 = vadd.f32 0.0, %v350
        %v352 = vpop.f32.mrf.mxu0
        %v353 = vpop.f32.mrf.mxu0
        %v354 = vadd.f32 0.0, %v353
        %v355 = vpop.f32.mrf.mxu0
        %356 = vmatprep.mubr.bf16.mxu0 0
        %357 = vmatmul.mubr.bf16.gmra.mxu0 %v246
        %v358 = vpop.f32.mrf.mxu0
        %v359 = vadd.f32 0.0, %v358
        %v360 = vpop.f32.mrf.mxu0
        %v361 = vpop.f32.mrf.mxu0
        %v362 = vadd.f32 0.0, %v361
        %v363 = vpop.f32.mrf.mxu0
        %364 = vmatprep.mubr.bf16.mxu0 0
        %365 = vmatmul.mubr.bf16.gmra.mxu0 %v247
        %v366 = vpop.f32.mrf.mxu0
        %v367 = vadd.f32 0.0, %v366
        %v368 = vpop.f32.mrf.mxu0
        %v369 = vpop.f32.mrf.mxu0
        %v370 = vadd.f32 0.0, %v369
        %v371 = vpop.f32.mrf.mxu0
        %372 = vmatprep.mubr.bf16.mxu0 0
        %373 = vmatmul.mubr.bf16.gmra.mxu0 %v248
        %v374 = vpop.f32.mrf.mxu0
        %v375 = vadd.f32 0.0, %v374
        %v376 = vpop.f32.mrf.mxu0
        %v377 = vpop.f32.mrf.mxu0
        %v378 = vadd.f32 0.0, %v377
        %v379 = vpop.f32.mrf.mxu0
        %380 = vmatprep.mubr.bf16.mxu0 0
        %381 = vmatmul.mubr.bf16.gmra.mxu0 %v249
        %v382 = vpop.f32.mrf.mxu0
        %v383 = vadd.f32 0.0, %v382
        %v384 = vpop.f32.mrf.mxu0
        %v385 = vpop.f32.mrf.mxu0
        %v386 = vadd.f32 0.0, %v385
        %v387 = vpop.f32.mrf.mxu0
        %388 = vmatprep.mubr.bf16.mxu0 0
        %389 = vmatmul.mubr.bf16.gmra.mxu0 %v250
        %v390 = vpop.f32.mrf.mxu0
        %v391 = vadd.f32 0.0, %v390
        %v392 = vpop.f32.mrf.mxu0
        %v393 = vpop.f32.mrf.mxu0
        %v394 = vadd.f32 0.0, %v393
        %v395 = vpop.f32.mrf.mxu0
        %396 = vmatprep.mubr.bf16.mxu0 0
        %397 = vmatmul.mubr.bf16.gmra.mxu0 %v251
        %v398 = vpop.f32.mrf.mxu0
        %v399 = vadd.f32 0.0, %v398
        %v400 = vpop.f32.mrf.mxu0
        %v401 = vpop.f32.mrf.mxu0
        %v402 = vadd.f32 0.0, %v401
        %v403 = vpop.f32.mrf.mxu0
        %404 = vdwg.mxu0
        %v405 = vpack.c.bf16 %v346, %v343
        %v406 = vpack.c.bf16 %v354, %v351
        %v407 = vpack.c.bf16 %v362, %v359
        %v408 = vpack.c.bf16 %v370, %v367
        %v409 = vpack.c.bf16 %v378, %v375
        %v410 = vpack.c.bf16 %v386, %v383
        %v411 = vpack.c.bf16 %v394, %v391
        %v412 = vpack.c.bf16 %v402, %v399
        %v421 = vunpack.c.l.b16 %v405
        %v422 = vunpack.c.h.b16 %v405
        %v423 = vunpack.c.l.b16 %v406
        %v424 = vunpack.c.h.b16 %v406
        %v425 = vunpack.c.l.b16 %v407
        %v426 = vunpack.c.h.b16 %v407
        %v427 = vunpack.c.l.b16 %v408
        %v428 = vunpack.c.h.b16 %v408
        %v429 = vunpack.c.l.b16 %v409
        %v430 = vunpack.c.h.b16 %v409
        %v431 = vunpack.c.l.b16 %v410
        %v432 = vunpack.c.h.b16 %v410
        %v433 = vunpack.c.l.b16 %v411
        %v434 = vunpack.c.h.b16 %v411
        %v435 = vunpack.c.l.b16 %v412
        %v436 = vunpack.c.h.b16 %v412
        %v437 = vpack.c.b16 %v421, %v421
        %v438 = vpack.c.b16 %v422, %v422
        %v439 = vpack.c.b16 %v423, %v423
        %v440 = vpack.c.b16 %v424, %v424
        %v441 = vpack.c.b16 %v425, %v425
        %v442 = vpack.c.b16 %v426, %v426
        %v443 = vpack.c.b16 %v427, %v427
        %v444 = vpack.c.b16 %v428, %v428
        %v445 = vpack.c.b16 %v429, %v429
        %v446 = vpack.c.b16 %v430, %v430
        %v447 = vpack.c.b16 %v431, %v431
        %v448 = vpack.c.b16 %v432, %v432
        %v449 = vpack.c.b16 %v433, %v433
        %v450 = vpack.c.b16 %v434, %v434
        %v451 = vpack.c.b16 %v435, %v435
        %v452 = vpack.c.b16 %v436, %v436
        %469 = vst [vmem:[%s176] sm:$0xf] %v437
        %470 = vst [vmem:[%s176 + $0x4] sm:$0xf] %v438
        %471 = vst [vmem:[%s176 + $0x8] sm:$0xf] %v439
        %472 = vst [vmem:[%s176 + $0xc] sm:$0xf] %v440
        %473 = vst [vmem:[%s176 + $0x10] sm:$0xf] %v441
        %474 = vst [vmem:[%s176 + $0x14] sm:$0xf] %v442
        %475 = vst [vmem:[%s176 + $0x18] sm:$0xf] %v443
        %476 = vst [vmem:[%s176 + $0x1c] sm:$0xf] %v444
        %477 = vst [vmem:[%s176 + $0x20] sm:$0xf] %v445
        %478 = vst [vmem:[%s176 + $0x24] sm:$0xf] %v446
        %479 = vst [vmem:[%s176 + $0x28] sm:$0xf] %v447
        %480 = vst [vmem:[%s176 + $0x2c] sm:$0xf] %v448
        %481 = vst [vmem:[%s176 + $0x30] sm:$0xf] %v449
        %482 = vst [vmem:[%s176 + $0x34] sm:$0xf] %v450
        %483 = vst [vmem:[%s176 + $0x38] sm:$0xf] %v451
        %484 = vst [vmem:[%s176 + $0x3c] sm:$0xf] %v452
        %s485 = sand.u32 %s75, 1
        %s486 = scalar_lea.sflag [#allocation4], %s485
        %s487 = sand.u32 %s75, 1
        %s488 = smul.addr %s487, 64
        %s489 = scalar_lea.vmem [#allocation7], %s488
        // Predicated region
        $region37: #{tpu_custom_call.1} parent=27 // pred_check
          %p490 = pneg %p85
        $region38: #{tpu_custom_call.1} parent=27 // pred_check_branch
          %492 = sbr.rel (%p490) target = $region40
        $region39: #{tpu_custom_call.1} parent=27 // pred_region
          %s493 = smul.u32 16, %s20
          %s495 = ssub.s32 1024, 1024
          %496 = vsyncadd %s486, %s495
          %s497 = smul.addr %s493, 64
          %s498 = scalar_lea.hbm %s2, %s497
          %s499 = sshll.u32 %s489, 4
          %s500 = int_to_ptr.vmem [resolvable:$true] %s499
          %505 = dma.vmem_to_hbm [thread:$0]  %s500, 1024, %s498, %s486, 64, 64, 4
        $region40: #{tpu_custom_call.1} parent=27 // pred_fallthru
          _
      $region28: #{tpu_custom_call.1} parent=5 // pred_fallthru
        _
      %p506 = scmp.le.s32.totalorder 2, %s15
      // Predicated region
      $region41: #{tpu_custom_call.1} parent=5 // pred_check
        %p507 = pneg %p506
      $region42: #{tpu_custom_call.1} parent=5 // pred_check_branch
        %509 = sbr.rel (%p507) target = $region44
      $region43: #{tpu_custom_call.1} parent=5 // pred_region
        %s510 = ssub.s32 %s15, 2
        // Predicated region
        $region45: #{tpu_custom_call.1} parent=43 // pred_check
          %p511 = pneg %p91
        $region46: #{tpu_custom_call.1} parent=43 // pred_check_branch
          %513 = sbr.rel (%p511) target = $region48
        $region47: #{tpu_custom_call.1} parent=43 // pred_region
          %s514 = sand.u32 %s76, 1
          %s515 = scalar_lea.sflag [#allocation4], %s514
          %s516 = sand.u32 %s76, 1
          %s517 = smul.addr %s516, 64
          %s518 = scalar_lea.vmem [#allocation7], %s517
          %519 = dma.done %s515, 1024
        $region48: #{tpu_custom_call.1} parent=43 // pred_fallthru
          _
      $region44: #{tpu_custom_call.1} parent=5 // pred_fallthru
        _
    $region6: #{tpu_custom_call.1} parent=1 // loop_footer
      %s19 = sadd.s32 1, %s15
    $region7: #{tpu_custom_call.1} parent=1 // loop_footer_branch
      %14 = sbr.rel target = $region3
    $region8: #{tpu_custom_call.1} parent=1 // loop_exit
      _
    %520 = vsyncpa [#allocation3], 1
    %s521 = scalar_lea.sflag [#allocation3], 1
    %522 = vsyncpa %s521, 1
    %523 = vsyncpa [#allocation6], 1
    %524 = vsyncpa [#allocation4], 1
    %s525 = scalar_lea.sflag [#allocation4], 1
    %526 = vsyncpa %s525, 1

</llo_original>
